<compile_context>
chip_gen: v5e
topology: v5e:2x2
jax: 0.10.0
libtpu: 0.0.40
codegen_flags: <defaults>
</compile_context>

<pallas_src>
import functools
import math

import jax
import jax.numpy as jnp
from jax.experimental import pallas as pl
from jax.experimental.pallas import tpu as pltpu


# ----------------------------------------------------------------------------- helpers
def _round_up(x, m):
    return (x + m - 1) // m * m


# TODO(synk): torch nn.GELU() default is erf-exact; the tanh approximation is
# used for robust Mosaic lowering (max abs deviation ~1e-3); the in-file
# reference uses the same formula so validation is apples-to-apples.
def _gelu(x):
    c = math.sqrt(2.0 / math.pi)
    return 0.5 * x * (1.0 + jnp.tanh(c * (x + 0.044715 * x * x * x)))


def _tpu_defaults():
    """Generation-aware VMEM limit / tile defaults."""
    vmem_bytes = 128 * 1024 * 1024
    try:
        info = pltpu.get_tpu_info()
        vmem_bytes = int(getattr(info, "vmem_capacity_bytes", vmem_bytes))
    except Exception:
        pass
    if vmem_bytes <= 64 * 1024 * 1024:          # v7x-class: 64 MiB per TensorCore
        return dict(vmem_limit=36 * 1024 * 1024, tm_default=256,
                    attn_budget=2 * 1024 * 1024)
    # v5e / v6e: 128 MiB physical VMEM
    return dict(vmem_limit=64 * 1024 * 1024, tm_default=1024,
                attn_budget=4 * 1024 * 1024)


def _choose_tm(M, bytes_per_row, hw):
    """Row tile: biggest within a VMEM byte budget, >=2 grid steps where possible."""
    budget = hw["vmem_limit"] // 4              # leave room for resident W + double buffers
    tm = min(hw["tm_default"], max(8, budget // max(bytes_per_row, 1)))
    if M > 8:
        tm = min(tm, pl.cdiv(M, 2))             # both v7x TensorCores get work
    tm = min(tm, M)
    tm = max(8, (tm // 8) * 8)
    return tm


def _compiler_params(hw, dims):
    return pltpu.CompilerParams(dimension_semantics=dims,
                                vmem_limit_bytes=hw["vmem_limit"])


# ----------------------------------------------------------------------------- kernels
def _make_fused_linear_kernel(has_ln, has_bias, has_residual, activation, eps):
    """out = act((LN(x)) @ W + bias) [+ residual], LN fused in-VMEM before the MXU."""

    def kernel(*refs):
        idx = 0
        x_ref = refs[idx]; idx += 1
        if has_ln:
            g_ref, b_ref = refs[idx], refs[idx + 1]; idx += 2
        w_ref = refs[idx]; idx += 1
        if has_bias:
            bias_ref = refs[idx]; idx += 1
        if has_residual:
            r_ref = refs[idx]; idx += 1
        o_ref = refs[idx]

        x = x_ref[...].astype(jnp.float32)                        # (tm, K)
        if has_ln:
            mean = jnp.mean(x, axis=-1, keepdims=True)
            var = jnp.mean(jnp.square(x - mean), axis=-1, keepdims=True)
            x = (x - mean) / (jnp.sqrt(var) + eps)                # torch: (x-mu)/(std+eps)
            x = x * g_ref[...] + b_ref[...]
        y = jnp.dot(x.astype(w_ref.dtype), w_ref[...],
                    preferred_element_type=jnp.float32)
        if has_bias:
            y = y + bias_ref[...]
        if activation is not None:
            y = activation(y)
        if has_residual:
            y = y + r_ref[...].astype(jnp.float32)
        o_ref[...] = y.astype(o_ref.dtype)

    return kernel


def _ln_patch_linear_kernel(x_ref, g_ref, b_ref, w_ref, o_ref, acc_ref, *, eps):
    """Strided kxk conv as a K-streamed matmul over patch positions, LN fused."""
    p = pl.program_id(1)

    @pl.when(p == 0)
    def _init():
        acc_ref[...] = jnp.zeros_like(acc_ref)

    x = x_ref[0].astype(jnp.float32)                              # (tm, C) pixels at pos p
    mean = jnp.mean(x, axis=-1, keepdims=True)
    var = jnp.mean(jnp.square(x - mean), axis=-1, keepdims=True)
    xn = (x - mean) / (jnp.sqrt(var) + eps)
    xn = xn * g_ref[...] + b_ref[...]
    acc_ref[...] += jnp.dot(xn.astype(w_ref.dtype), w_ref[0],
                            preferred_element_type=jnp.float32)

    @pl.when(p == pl.num_programs(1) - 1)
    def _store():
        o_ref[...] = acc_ref[...].astype(o_ref.dtype)


def _attention_kernel(q_ref, kt_ref, v_ref, o_ref, *, scale):
    """softmax(q @ kT * scale) @ v ; kT pre-transposed to (tg, Dh, Lk)."""
    dots = jnp.einsum("gid,gdj->gij", q_ref[...], kt_ref[...],
                      preferred_element_type=jnp.float32) * scale
    m = jnp.max(dots, axis=-1, keepdims=True)
    p = jnp.exp(dots - m)
    denom = jnp.sum(p, axis=-1, keepdims=True)
    attn = p * pl.reciprocal(denom, approx=True)                  # EUP slot, VALU-free
    out = jnp.einsum("gij,gjd->gid", attn.astype(v_ref.dtype), v_ref[...],
                     preferred_element_type=jnp.float32)
    o_ref[...] = out.astype(o_ref.dtype)


# ----------------------------------------------------------------------------- pallas wrappers
def pallas_fused_linear(x2, w, *, ln_g=None, ln_b=None, bias=None, residual=None,
                        activation=None, eps=1e-5, hw):
    M, K = x2.shape
    N = w.shape[-1]
    out_dtype = x2.dtype
    itemsize = jnp.dtype(x2.dtype).itemsize
    bytes_per_row = (K + 2 * N) * itemsize + N * 4
    tm = _choose_tm(M, bytes_per_row, hw)
    Mp = _round_up(M, tm)
    if Mp != M:
        x2 = jnp.pad(x2, ((0, Mp - M), (0, 0)))
        if residual is not None:
            residual = jnp.pad(residual, ((0, Mp - M), (0, 0)))

    has_ln = ln_g is not None
    has_bias = bias is not None
    has_res = residual is not None

    in_specs = [pl.BlockSpec((tm, K), lambda i: (i, 0))]
    args = [x2]
    if has_ln:
        in_specs += [pl.BlockSpec((1, K), lambda i: (0, 0)),
                     pl.BlockSpec((1, K), lambda i: (0, 0))]
        args += [ln_g.reshape(1, K).astype(jnp.float32),
                 ln_b.reshape(1, K).astype(jnp.float32)]
    in_specs.append(pl.BlockSpec((K, N), lambda i: (0, 0)))       # resident weight
    args.append(w)
    if has_bias:
        in_specs.append(pl.BlockSpec((1, N), lambda i: (0, 0)))
        args.append(bias.reshape(1, N).astype(jnp.float32))
    if has_res:
        in_specs.append(pl.BlockSpec((tm, N), lambda i: (i, 0)))
        args.append(residual)

    kernel = _make_fused_linear_kernel(has_ln, has_bias, has_res, activation, eps)
    out = pl.pallas_call(
        kernel,
        out_shape=jax.ShapeDtypeStruct((Mp, N), out_dtype),
        grid_spec=pltpu.PrefetchScalarGridSpec(
            num_scalar_prefetch=0,
            grid=(Mp // tm,),
            in_specs=in_specs,
            out_specs=pl.BlockSpec((tm, N), lambda i: (i, 0)),
        ),
        compiler_params=_compiler_params(hw, ("parallel",)),
    )(*args)
    return out[:M] if Mp != M else out


def pallas_ln_patch_linear(xp, w_p, ln_g, ln_b, *, eps=1e-5, hw):
    """xp: (P, M, C) pixels per patch position; w_p: (P, C, N) -> (M, N)."""
    P, M, C = xp.shape
    N = w_p.shape[-1]
    out_dtype = xp.dtype
    itemsize = jnp.dtype(xp.dtype).itemsize
    bytes_per_row = 2 * C * itemsize + 2 * N * 4
    tm = _choose_tm(M, bytes_per_row, hw)
    Mp = _round_up(M, tm)
    if Mp != M:
        xp = jnp.pad(xp, ((0, 0), (0, Mp - M), (0, 0)))

    out = pl.pallas_call(
        functools.partial(_ln_patch_linear_kernel, eps=eps),
        out_shape=jax.ShapeDtypeStruct((Mp, N), out_dtype),
        grid_spec=pltpu.PrefetchScalarGridSpec(
            num_scalar_prefetch=0,
            grid=(Mp // tm, P),                                   # reduction axis last
            in_specs=[
                pl.BlockSpec((1, tm, C), lambda i, p: (p, i, 0)),
                pl.BlockSpec((1, C), lambda i, p: (0, 0)),
                pl.BlockSpec((1, C), lambda i, p: (0, 0)),
                pl.BlockSpec((1, C, N), lambda i, p: (p, 0, 0)),  # streamed weight slice
            ],
            out_specs=pl.BlockSpec((tm, N), lambda i, p: (i, 0)),
            scratch_shapes=[pltpu.VMEM((tm, N), jnp.float32)],
        ),
        compiler_params=_compiler_params(hw, ("parallel", "arbitrary")),
    )(xp, ln_g.reshape(1, C).astype(jnp.float32),
      ln_b.reshape(1, C).astype(jnp.float32), w_p)
    return out[:M] if Mp != M else out


def pallas_attention(q, kT, v, scale, *, hw):
    """q:[G,Lq,Dh], kT:[G,Dh,Lk], v:[G,Lk,Dh] -> softmax(q kT * scale) v."""
    G, Lq, Dh = q.shape
    Lk = v.shape[1]
    out_dtype = q.dtype
    itemsize = jnp.dtype(q.dtype).itemsize

    # Tile Lq when large so we never materialize a (tg, Lq, Lk) f32 score tensor.
    tlq = Lq if Lq <= 512 else 256
    Lqp = _round_up(Lq, tlq)

    per_group = (tlq * Dh + 2 * Lk * Dh) * itemsize + (tlq * Lk + tlq * Dh) * 4
    tg = max(1, hw["attn_budget"] // max(per_group, 1))
    tg = min(tg, G)
    if G > 1:
        tg = min(tg, pl.cdiv(G, 2))                               # >=2 grid steps (v7x)
    Gp = _round_up(G, tg)

    if Gp != G or Lqp != Lq:
        q = jnp.pad(q, ((0, Gp - G), (0, Lqp - Lq), (0, 0)))
        kT = jnp.pad(kT, ((0, Gp - G), (0, 0), (0, 0)))
        v = jnp.pad(v, ((0, Gp - G), (0, 0), (0, 0)))

    out = pl.pallas_call(
        functools.partial(_attention_kernel, scale=scale),
        out_shape=jax.ShapeDtypeStruct((Gp, Lqp, Dh), out_dtype),
        grid_spec=pltpu.PrefetchScalarGridSpec(
            num_scalar_prefetch=0,
            grid=(Gp // tg, Lqp // tlq),
            in_specs=[
                pl.BlockSpec((tg, tlq, Dh), lambda g, l: (g, l, 0)),
                pl.BlockSpec((tg, Dh, Lk), lambda g, l: (g, 0, 0)),
                pl.BlockSpec((tg, Lk, Dh), lambda g, l: (g, 0, 0)),
            ],
            out_specs=pl.BlockSpec((tg, tlq, Dh), lambda g, l: (g, l, 0)),
        ),
        compiler_params=_compiler_params(hw, ("parallel", "parallel")),
    )(q, kT, v)
    if Gp != G or Lqp != Lq:
        out = out[:G, :Lq]
    return out


# ----------------------------------------------------------------------------- pure-JAX reference ops
def _ref_ln(x2, g, b, eps=1e-5):
    mean = jnp.mean(x2, axis=-1, keepdims=True)
    var = jnp.var(x2, axis=-1, keepdims=True)
    return (x2 - mean) / (jnp.sqrt(var) + eps) * g + b


def _ref_fused_linear(x2, w, *, ln_g=None, ln_b=None, bias=None, residual=None,
                      activation=None, eps=1e-5):
    y = x2.astype(jnp.float32)
    if ln_g is not None:
        y = _ref_ln(y, ln_g.astype(jnp.float32), ln_b.astype(jnp.float32), eps)
    y = y @ w.astype(jnp.float32)
    if bias is not None:
        y = y + bias.astype(jnp.float32)
    if activation is not None:
        y = activation(y)
    if residual is not None:
        y = y + residual.astype(jnp.float32)
    return y.astype(x2.dtype)


def _ref_ln_patch_linear(xp, w_p, ln_g, ln_b, eps=1e-5):
    x = xp.astype(jnp.float32)
    mean = jnp.mean(x, axis=-1, keepdims=True)
    var = jnp.var(x, axis=-1, keepdims=True)
    xn = (x - mean) / (jnp.sqrt(var) + eps) * ln_g.astype(jnp.float32) + ln_b.astype(jnp.float32)
    out = jnp.einsum("pmc,pcn->mn", xn, w_p.astype(jnp.float32))
    return out.astype(xp.dtype)


def _ref_attention(q, kT, v, scale):
    dots = jnp.einsum("gid,gdj->gij", q.astype(jnp.float32),
                      kT.astype(jnp.float32)) * scale
    attn = jax.nn.softmax(dots, axis=-1)
    out = jnp.einsum("gij,gjd->gid", attn, v.astype(jnp.float32))
    return out.astype(q.dtype)


# ----------------------------------------------------------------------------- dispatch
def _fused_linear(x2, w, *, use_pallas, hw, ln_g=None, ln_b=None, bias=None,
                  residual=None, activation=None):
    if use_pallas:
        return pallas_fused_linear(x2, w, ln_g=ln_g, ln_b=ln_b, bias=bias,
                                   residual=residual, activation=activation, hw=hw)
    return _ref_fused_linear(x2, w, ln_g=ln_g, ln_b=ln_b, bias=bias,
                             residual=residual, activation=activation)


def _patch_linear(xp, w_p, ln_g, ln_b, use_pallas, hw):
    if use_pallas:
        return pallas_ln_patch_linear(xp, w_p, ln_g, ln_b, hw=hw)
    return _ref_ln_patch_linear(xp, w_p, ln_g, ln_b)


def _attention(q, kT, v, scale, use_pallas, hw):
    if use_pallas:
        return pallas_attention(q, kT, v, scale, hw=hw)
    return _ref_attention(q, kT, v, scale)


# ----------------------------------------------------------------------------- transformer blocks (channels-last)
def _to_groups_local(t, B, X, Y, p, heads, dh, transpose_seq=False):
    # rows ordered (B, X, p1, Y, p2); channels (h, d)
    t = t.reshape(B, X, p, Y, p, heads, dh)
    if transpose_seq:                                   # k -> (G, Dh, Lk), folded transpose
        t = t.transpose(0, 1, 3, 5, 6, 2, 4)            # (B, X, Y, h, d, p1, p2)
        return t.reshape(B * X * Y * heads, dh, p * p)
    t = t.transpose(0, 1, 3, 5, 2, 4, 6)                # (B, X, Y, h, p1, p2, d)
    return t.reshape(B * X * Y * heads, p * p, dh)


def local_attention_block(x, p, heads, dh, prm, use_pallas, hw):
    """Residual(PreNorm(LocalAttention)) on x:[B,H,W,C]."""
    B, H, W, C = x.shape
    inner = heads * dh
    M = B * H * W
    x_flat = x.reshape(M, C)

    # fused LN + merged q/k/v projection (one HBM pass over x)
    qkv = _fused_linear(x_flat, prm["wqkv"], ln_g=prm["ln_g"], ln_b=prm["ln_b"],
                        use_pallas=use_pallas, hw=hw)
    q, k_, v_ = qkv[:, :inner], qkv[:, inner:2 * inner], qkv[:, 2 * inner:]

    X, Y = H // p, W // p
    qg = _to_groups_local(q, B, X, Y, p, heads, dh)
    kT = _to_groups_local(k_, B, X, Y, p, heads, dh, transpose_seq=True)
    vg = _to_groups_local(v_, B, X, Y, p, heads, dh)

    og = _attention(qg, kT, vg, dh ** -0.5, use_pallas, hw)

    o = og.reshape(B, X, Y, heads, p, p, dh)
    o = o.transpose(0, 1, 4, 2, 5, 3, 6).reshape(M, inner)        # back to (B,H,W,(h d))
    out = _fused_linear(o, prm["wo"], bias=prm["bo"], residual=x_flat,
                        use_pallas=use_pallas, hw=hw)
    return out.reshape(B, H, W, C)


def global_attention_block(x, ksz, heads, dh, prm, use_pallas, hw):
    """Residual(PreNorm(GlobalAttention)) on x:[B,H,W,C]."""
    B, H, W, C = x.shape
    inner = heads * dh
    M = B * H * W
    x_flat = x.reshape(M, C)

    # fused LN + q projection (xn never materialized in HBM)
    q = _fused_linear(x_flat, prm["wq"], ln_g=prm["ln_g"], ln_b=prm["ln_b"],
                      use_pallas=use_pallas, hw=hw)

    # k x k stride-k conv (no bias) as a K-streamed matmul over patch positions,
    # with the per-pixel LN fused in-kernel.
    Hk, Wk = H // ksz, W // ksz
    P = ksz * ksz
    patches_t = x.reshape(B, Hk, ksz, Wk, ksz, C).transpose(2, 4, 0, 1, 3, 5)
    patches_t = patches_t.reshape(P, B * Hk * Wk, C)              # (pos, patch, C)
    kv = _patch_linear(patches_t, prm["wkv_p"], prm["ln_g"], prm["ln_b"],
                       use_pallas, hw)
    k_, v_ = kv[:, :inner], kv[:, inner:]

    qg = q.reshape(B, H, W, heads, dh).transpose(0, 3, 1, 2, 4)
    qg = qg.reshape(B * heads, H * W, dh)
    kT = k_.reshape(B, Hk, Wk, heads, dh).transpose(0, 3, 4, 1, 2)
    kT = kT.reshape(B * heads, dh, Hk * Wk)                        # pre-transposed K
    vg = v_.reshape(B, Hk, Wk, heads, dh).transpose(0, 3, 1, 2, 4)
    vg = vg.reshape(B * heads, Hk * Wk, dh)

    og = _attention(qg, kT, vg, dh ** -0.5, use_pallas, hw)
    o = og.reshape(B, heads, H, W, dh).transpose(0, 2, 3, 1, 4).reshape(M, inner)
    out = _fused_linear(o, prm["wo"], bias=prm["bo"], residual=x_flat,
                        use_pallas=use_pallas, hw=hw)
    return out.reshape(B, H, W, C)


def feed_forward_block(x, prm, use_pallas, hw):
    """Residual(PreNorm(FeedForward)): fused LN+1x1 conv+GELU, then 1x1 conv+residual."""
    B, H, W, C = x.shape
    M = B * H * W
    x_flat = x.reshape(M, C)
    h1 = _fused_linear(x_flat, prm["w1"], ln_g=prm["ln_g"], ln_b=prm["ln_b"],
                       bias=prm["b1"], activation=_gelu, use_pallas=use_pallas, hw=hw)
    out = _fused_linear(h1, prm["w2"], bias=prm["b2"], residual=x_flat,
                        use_pallas=use_pallas, hw=hw)
    return out.reshape(B, H, W, C)


def _prepare_params(params, model_cfg, compute_dtype):
    """Cast matmul weights once per forward, merge wq/wkv, reshape global conv weight."""
    ksz, dim = model_cfg["global_k"], model_cfg["dim"]

    def cw(w):
        return w.astype(compute_dtype) if compute_dtype is not None else w

    prepared = []
    for layer in params["layers"]:
        entry = {}
        if model_cfg["has_local"]:
            l = layer["local"]
            entry["local"] = dict(
                ln_g=l["ln_g"], ln_b=l["ln_b"],
                wqkv=cw(jnp.concatenate([l["wq"], l["wkv"]], axis=1)),
                wo=cw(l["wo"]), bo=l["bo"])
            f = layer["ff1"]
            entry["ff1"] = dict(ln_g=f["ln_g"], ln_b=f["ln_b"],
                                w1=cw(f["w1"]), b1=f["b1"], w2=cw(f["w2"]), b2=f["b2"])
        g = layer["global_attn"]
        entry["global_attn"] = dict(
            ln_g=g["ln_g"], ln_b=g["ln_b"], wq=cw(g["wq"]),
            wkv_p=cw(g["wkv"].reshape(ksz * ksz, dim, -1)),        # (pos, C, 2*inner)
            wo=cw(g["wo"]), bo=g["bo"])
        f = layer["ff2"]
        entry["ff2"] = dict(ln_g=f["ln_g"], ln_b=f["ln_b"],
                            w1=cw(f["w1"]), b1=f["b1"], w2=cw(f["w2"]), b2=f["b2"])
        prepared.append(entry)
    return prepared


def transformer_forward(x_nchw, params, model_cfg, use_pallas=True, compute_dtype=None):
    """Matches Transformer.forward; x_nchw: [B, C, H, W].

    compute_dtype=jnp.bfloat16 keeps the activation stream + MXU operands in
    bf16 (f32 accumulation in-kernel); None keeps everything f32.
    """
    hw = _tpu_defaults()
    in_dtype = x_nchw.dtype
    x = jnp.transpose(x_nchw, (0, 2, 3, 1))                        # NCHW -> NHWC (lane-dense C)
    if compute_dtype is not None:
        x = x.astype(compute_dtype)
    layers = _prepare_params(params, model_cfg, compute_dtype)
    heads, dh = model_cfg["heads"], model_cfg["dim_head"]
    for layer in layers:
        if model_cfg["has_local"]:
            x = local_attention_block(x, model_cfg["local_patch_size"], heads, dh,
                                      layer["local"], use_pallas, hw)
            x = feed_forward_block(x, layer["ff1"], use_pallas, hw)
        x = global_attention_block(x, model_cfg["global_k"], heads, dh,
                                   layer["global_attn"], use_pallas, hw)
        x = feed_forward_block(x, layer["ff2"], use_pallas, hw)
    x = x.astype(in_dtype)
    return jnp.transpose(x, (0, 3, 1, 2))                          # back to NCHW


# ----------------------------------------------------------------------------- params
def init_params(key, cfg):
    dim, heads, dh = cfg["dim"], cfg["heads"], cfg["dim_head"]
    inner, mult, ksz = heads * dh, cfg["mlp_mult"], cfg["global_k"]

    def nrm(k, shape, fan_in):
        return jax.random.normal(k, shape, jnp.float32) * (1.0 / fan_in) ** 0.5

    def ff_params(keys):
        return dict(
            ln_g=jnp.ones((dim,), jnp.float32), ln_b=jnp.zeros((dim,), jnp.float32),
            w1=nrm(keys[0], (dim, dim * mult), dim),
            b1=jax.random.normal(keys[1], (dim * mult,), jnp.float32) * 0.01,
            w2=nrm(keys[2], (dim * mult, dim), dim * mult),
            b2=jax.random.normal(keys[3], (dim,), jnp.float32) * 0.01,
        )

    layers = []
    for _ in range(cfg["depth"]):
        key, *ks = jax.random.split(key, 17)
        local = dict(
            ln_g=jnp.ones((dim,), jnp.float32), ln_b=jnp.zeros((dim,), jnp.float32),
            wq=nrm(ks[0], (dim, inner), dim),
            wkv=nrm(ks[1], (dim, 2 * inner), dim),
            wo=nrm(ks[2], (inner, dim), inner),
            bo=jax.random.normal(ks[3], (dim,), jnp.float32) * 0.01,
        )
        glob = dict(
            ln_g=jnp.ones((dim,), jnp.float32), ln_b=jnp.zeros((dim,), jnp.float32),
            wq=nrm(ks[4], (dim, inner), dim),
            wkv=nrm(ks[5], (ksz * ksz * dim, 2 * inner), ksz * ksz * dim),
            wo=nrm(ks[6], (inner, dim), inner),
            bo=jax.random.normal(ks[7], (dim,), jnp.float32) * 0.01,
        )
        layers.append(dict(local=local, ff1=ff_params(ks[8:12]),
                           global_attn=glob, ff2=ff_params(ks[12:16])))
    return dict(layers=layers)


# ----------------------------------------------------------------------------- main
if __name__ == "__main__":
    model_cfg = dict(dim=32, depth=1, heads=2, dim_head=16, mlp_mult=2,
                     local_patch_size=4, global_k=4, has_local=True)
    B, H, W = 2, 8, 8

    key = jax.random.PRNGKey(0)
    kx, kp = jax.random.split(key)
    x = jax.random.normal(kx, (B, model_cfg["dim"], H, W), dtype=jnp.float32)
    params = init_params(kp, model_cfg)

    # f32 path: numerics check against the pure-JAX reference.
    out = transformer_forward(x, params, model_cfg, use_pallas=True)
    jax.block_until_ready(out)
    ref = transformer_forward(x, params, model_cfg, use_pallas=False)
    assert out.shape == x.shape, (out.shape, x.shape)
    err = float(jnp.max(jnp.abs(out - ref)))
    # Tolerance accounts for MXU default-precision f32 matmuls and the EUP
    # approx-reciprocal softmax normalization vs the XLA reference path.
    assert jnp.allclose(out, ref, atol=3e-2, rtol=3e-2), f"f32 max abs err = {err}"

    # bf16 MXU path (production mode): exercise and sanity-check it.
    out_bf16 = transformer_forward(x, params, model_cfg, use_pallas=True,
                                   compute_dtype=jnp.bfloat16)
    jax.block_until_ready(out_bf16)
    assert out_bf16.shape == x.shape
    assert bool(jnp.all(jnp.isfinite(out_bf16)))
    err_bf16 = float(jnp.max(jnp.abs(out_bf16 - ref)))
    assert jnp.allclose(out_bf16, ref, atol=3e-1, rtol=3e-1), \
        f"bf16 max abs err = {err_bf16}"

    print("KERNEL_OK")
</pallas_src>

<mosaic_0001>
module attributes {stable_mosaic.version = 11 : i64} {
  func.func @kernel(%arg0: i32, %arg1: memref<64x32xf32, #tpu.memory_space<vmem>>, %arg2: memref<1x32xf32, #tpu.memory_space<vmem>>, %arg3: memref<1x32xf32, #tpu.memory_space<vmem>>, %arg4: memref<32x96xf32, #tpu.memory_space<vmem>>, %arg5: memref<64x96xf32, #tpu.memory_space<vmem>>) attributes {dimension_semantics = [#tpu.dimension_semantics<parallel>], iteration_bounds = array<i64: 2>, scalar_prefetch = 0 : i64, scratch_operands = 0 : i64, tpu.core_type = #tpu.core_type<tc>, window_params = [{transform_indices = @transform_0, window_bounds = array<i64: 64, 32>}, {pipeline_mode = #tpu.pipeline_mode<synchronous>, transform_indices = @transform_1, window_bounds = array<i64: 1, 32>}, {pipeline_mode = #tpu.pipeline_mode<synchronous>, transform_indices = @transform_2, window_bounds = array<i64: 1, 32>}, {pipeline_mode = #tpu.pipeline_mode<synchronous>, transform_indices = @transform_3, window_bounds = array<i64: 32, 96>}, {transform_indices = @transform_4, window_bounds = array<i64: 64, 96>}]} {
    %c0 = arith.constant 0 : index
    %c0_0 = arith.constant 0 : index
    %0 = vector.load %arg1[%c0, %c0_0] : memref<64x32xf32, #tpu.memory_space<vmem>>, vector<64x32xf32>
    %cst = arith.constant dense<0.000000e+00> : vector<64xf32>
    %1 = vector.multi_reduction <add>, %0, %cst [1] : vector<64x32xf32> to vector<64xf32>
    %2 = vector.shape_cast %1 : vector<64xf32> to vector<64x1xf32>
    %cst_1 = arith.constant 3.200000e+01 : f32
    %3 = vector.broadcast %cst_1 : f32 to vector<64x1xf32>
    %4 = arith.divf %2, %3 : vector<64x1xf32>
    %5 = vector.broadcast %4 : vector<64x1xf32> to vector<64x32xf32>
    %6 = arith.subf %0, %5 : vector<64x32xf32>
    %7 = arith.mulf %6, %6 : vector<64x32xf32>
    %cst_2 = arith.constant dense<0.000000e+00> : vector<64xf32>
    %8 = vector.multi_reduction <add>, %7, %cst_2 [1] : vector<64x32xf32> to vector<64xf32>
    %9 = vector.shape_cast %8 : vector<64xf32> to vector<64x1xf32>
    %cst_3 = arith.constant 3.200000e+01 : f32
    %10 = vector.broadcast %cst_3 : f32 to vector<64x1xf32>
    %11 = arith.divf %9, %10 : vector<64x1xf32>
    %12 = vector.broadcast %4 : vector<64x1xf32> to vector<64x32xf32>
    %13 = arith.subf %0, %12 : vector<64x32xf32>
    %14 = math.sqrt %11 : vector<64x1xf32>
    %cst_4 = arith.constant 9.99999974E-6 : f32
    %15 = vector.broadcast %cst_4 : f32 to vector<64x1xf32>
    %16 = arith.addf %14, %15 : vector<64x1xf32>
    %17 = vector.broadcast %16 : vector<64x1xf32> to vector<64x32xf32>
    %18 = arith.divf %13, %17 : vector<64x32xf32>
    %c0_5 = arith.constant 0 : index
    %c0_6 = arith.constant 0 : index
    %19 = vector.load %arg2[%c0_5, %c0_6] : memref<1x32xf32, #tpu.memory_space<vmem>>, vector<1x32xf32>
    %20 = vector.broadcast %19 : vector<1x32xf32> to vector<64x32xf32>
    %21 = arith.mulf %18, %20 : vector<64x32xf32>
    %c0_7 = arith.constant 0 : index
    %c0_8 = arith.constant 0 : index
    %22 = vector.load %arg3[%c0_7, %c0_8] : memref<1x32xf32, #tpu.memory_space<vmem>>, vector<1x32xf32>
    %23 = vector.broadcast %22 : vector<1x32xf32> to vector<64x32xf32>
    %24 = arith.addf %21, %23 : vector<64x32xf32>
    %c0_9 = arith.constant 0 : index
    %c0_10 = arith.constant 0 : index
    %25 = vector.load %arg4[%c0_9, %c0_10] : memref<32x96xf32, #tpu.memory_space<vmem>>, vector<32x96xf32>
    %cst_11 = arith.constant dense<0.000000e+00> : vector<64x96xf32>
    %26 = tpu.matmul %24, %25, %cst_11 {dimension_numbers = #tpu.dot_dimension_numbers<[1], [0], [0], [1], [0, 0, 1, 1], [], []>} : vector<64x32xf32>, vector<32x96xf32>, vector<64x96xf32> -> vector<64x96xf32>
    %c0_12 = arith.constant 0 : index
    %c0_13 = arith.constant 0 : index
    %27 = vector.load %arg5[%c0_12, %c0_13] : memref<64x96xf32, #tpu.memory_space<vmem>>, vector<64x96xf32>
    tpu.vector_store %arg5[%c0_12, %c0_13], %26 {strides = array<i32>} : memref<64x96xf32, #tpu.memory_space<vmem>>, vector<64x96xf32>,
    return
  }
  func.func @transform_0(%arg0: i32) -> (i32, i32) {
    %c0_i32 = arith.constant 0 : i32
    %c0_i32_0 = arith.constant 0 : i32
    return %arg0, %c0_i32 : i32, i32
  }
  func.func @transform_1(%arg0: i32) -> (i32, i32) {
    %c0_i32 = arith.constant 0 : i32
    %c0_i32_0 = arith.constant 0 : i32
    %c0_i32_1 = arith.constant 0 : i32
    return %c0_i32, %c0_i32_0 : i32, i32
  }
  func.func @transform_2(%arg0: i32) -> (i32, i32) {
    %c0_i32 = arith.constant 0 : i32
    %c0_i32_0 = arith.constant 0 : i32
    %c0_i32_1 = arith.constant 0 : i32
    return %c0_i32, %c0_i32_0 : i32, i32
  }
  func.func @transform_3(%arg0: i32) -> (i32, i32) {
    %c0_i32 = arith.constant 0 : i32
    %c0_i32_0 = arith.constant 0 : i32
    %c0_i32_1 = arith.constant 0 : i32
    return %c0_i32, %c0_i32_0 : i32, i32
  }
  func.func @transform_4(%arg0: i32) -> (i32, i32) {
    %c0_i32 = arith.constant 0 : i32
    %c0_i32_0 = arith.constant 0 : i32
    return %arg0, %c0_i32 : i32, i32
  }
}

</mosaic_0001>

<llo_original>
// kernel: tpu_custom_call.1
$region0: #{tpu_custom_call.1}
  #allocation0 [shape = 'u32[]', space=smem, size = 0x4, offset = 0x4, fixed_abs, tag = 'smem constant byte address 0x4 - core index']
  #allocation1 [shape = 'u32[72,128]{1,0:T(1,128)}', space=vmem, size = 0x9000, scoped, tag = 'internal scratch']
  %s0 = inlined_call_operand.vmem [shape: f32[128,32], index: 0, kind: input, shape index: {}]
  %s1 = inlined_call_operand.vmem [shape: f32[1,32], index: 1, kind: input, shape index: {}]
  %s2 = inlined_call_operand.vmem [shape: f32[1,32], index: 2, kind: input, shape index: {}]
  %s3 = inlined_call_operand.vmem [shape: f32[32,96], index: 3, kind: input, shape index: {}]
  %s4 = inlined_call_operand.vmem [shape: f32[128,96], index: 4, kind: output, shape index: {}]
  %s5 = sld [smem:[#allocation0]]
  $region49: #{tpu_custom_call.1} parent=0
    _
  %s7 = ssub.s32 1, %s5
  %s8 = scalar_select 0, %s7, %s5
  loop: start=0, step=1, limit=4
  $region2: #{tpu_custom_call.1} parent=0 // loop_pre_header
    _
  $region3: #{tpu_custom_call.1} parent=0 // loop_header
    %s10 = sphi 0, %s14
    %p11 = scmp.ge.s32.totalorder %s10, 4
    %s20 = sphi 0, %s22
    %s23 = sphi 0, %s20
    %s24 = sphi 0, %s23
    %s40 = sphi 0, %s24
    %s44 = sphi 0, %s44
    %s46 = sphi 0, %s44
    %s47 = sphi 0, %s46
    %s61 = sphi 0, %s47
    %s65 = sphi 0, %s65
    %s67 = sphi 0, %s65
    %s68 = sphi 0, %s67
    %s82 = sphi 0, %s68
    %s86 = sphi 0, %s86
    %s88 = sphi 0, %s86
    %s89 = sphi 0, %s88
    %s103 = sphi 0, %s89
    %s109 = sphi 0, %s111
    %s112 = sphi 0, %s109
    %s113 = sphi 0, %s112
    %s129 = sphi 0, %s113
  $region4: #{tpu_custom_call.1} parent=0 // loop_header_branch
    %13 = sbr.rel (%p11) target = $region8
  $region5: #{tpu_custom_call.1} parent=0 // loop_body
    %s15 = ssub.s32 %s10, 1
    %s16 = ssub.s32 %s10, 2
    %s17 = sadd.s32 %s10, 1
    %s18 = ssub.s32 %s10, %s17
    %p19 = scmp.eq.s32.totalorder %s18, 0
    %s21 = sadd.s32 %s20, 1
    %s22 = scalar_select %p19, %s20, %s21
    %p25 = pneg %p19
    %p26 = scmp.eq.s32.totalorder %s10, 1
    %p27 = por %p25, %p26
    %p28 = scmp.ne.s32.totalorder %s20, %s23
    %p29 = scmp.eq.s32.totalorder %s10, 0
    %p30 = por %p28, %p29
    %p31 = scmp.ne.s32.totalorder %s20, %s23
    %p32 = scmp.eq.s32.totalorder %s15, 1
    %p33 = por %p31, %p32
    %p34 = scmp.ne.s32.totalorder %s23, %s24
    %p35 = scmp.eq.s32.totalorder %s15, 0
    %p36 = por %p34, %p35
    %p37 = scmp.ne.s32.totalorder %s23, %s24
    %p38 = scmp.eq.s32.totalorder %s16, 1
    %p39 = por %p37, %p38
    %p41 = scmp.ne.s32.totalorder %s24, %s40
    %p42 = scmp.eq.s32.totalorder %s16, 0
    %p43 = por %p41, %p42
    %s45 = sadd.s32 %s44, 1
    %p48 = scmp.eq.s32.totalorder %s10, 1
    %p49 = scmp.ne.s32.totalorder %s44, %s46
    %p50 = scmp.eq.s32.totalorder %s10, 0
    %p51 = por %p49, %p50
    %p52 = scmp.ne.s32.totalorder %s44, %s46
    %p53 = scmp.eq.s32.totalorder %s15, 1
    %p54 = por %p52, %p53
    %p55 = scmp.ne.s32.totalorder %s46, %s47
    %p56 = scmp.eq.s32.totalorder %s15, 0
    %p57 = por %p55, %p56
    %p58 = scmp.ne.s32.totalorder %s46, %s47
    %p59 = scmp.eq.s32.totalorder %s16, 1
    %p60 = por %p58, %p59
    %p62 = scmp.ne.s32.totalorder %s47, %s61
    %p63 = scmp.eq.s32.totalorder %s16, 0
    %p64 = por %p62, %p63
    %s66 = sadd.s32 %s65, 1
    %p69 = scmp.eq.s32.totalorder %s10, 1
    %p70 = scmp.ne.s32.totalorder %s65, %s67
    %p71 = scmp.eq.s32.totalorder %s10, 0
    %p72 = por %p70, %p71
    %p73 = scmp.ne.s32.totalorder %s65, %s67
    %p74 = scmp.eq.s32.totalorder %s15, 1
    %p75 = por %p73, %p74
    %p76 = scmp.ne.s32.totalorder %s67, %s68
    %p77 = scmp.eq.s32.totalorder %s15, 0
    %p78 = por %p76, %p77
    %p79 = scmp.ne.s32.totalorder %s67, %s68
    %p80 = scmp.eq.s32.totalorder %s16, 1
    %p81 = por %p79, %p80
    %p83 = scmp.ne.s32.totalorder %s68, %s82
    %p84 = scmp.eq.s32.totalorder %s16, 0
    %p85 = por %p83, %p84
    %s87 = sadd.s32 %s86, 1
    %p90 = scmp.eq.s32.totalorder %s10, 1
    %p91 = scmp.ne.s32.totalorder %s86, %s88
    %p92 = scmp.eq.s32.totalorder %s10, 0
    %p93 = por %p91, %p92
    %p94 = scmp.ne.s32.totalorder %s86, %s88
    %p95 = scmp.eq.s32.totalorder %s15, 1
    %p96 = por %p94, %p95
    %p97 = scmp.ne.s32.totalorder %s88, %s89
    %p98 = scmp.eq.s32.totalorder %s15, 0
    %p99 = por %p97, %p98
    %p100 = scmp.ne.s32.totalorder %s88, %s89
    %p101 = scmp.eq.s32.totalorder %s16, 1
    %p102 = por %p100, %p101
    %p104 = scmp.ne.s32.totalorder %s89, %s103
    %p105 = scmp.eq.s32.totalorder %s16, 0
    %p106 = por %p104, %p105
    %s107 = ssub.s32 %s10, %s17
    %p108 = scmp.eq.s32.totalorder %s107, 0
    %s110 = sadd.s32 %s109, 1
    %s111 = scalar_select %p108, %s109, %s110
    %p114 = pneg %p108
    %p115 = scmp.eq.s32.totalorder %s10, 1
    %p116 = por %p114, %p115
    %p117 = scmp.ne.s32.totalorder %s109, %s112
    %p118 = scmp.eq.s32.totalorder %s10, 0
    %p119 = por %p117, %p118
    %p120 = scmp.ne.s32.totalorder %s109, %s112
    %p121 = scmp.eq.s32.totalorder %s15, 1
    %p122 = por %p120, %p121
    %p123 = scmp.ne.s32.totalorder %s112, %s113
    %p124 = scmp.eq.s32.totalorder %s15, 0
    %p125 = por %p123, %p124
    %p126 = scmp.ne.s32.totalorder %s112, %s113
    %p127 = scmp.eq.s32.totalorder %s16, 1
    %p128 = por %p126, %p127
    %p130 = scmp.ne.s32.totalorder %s113, %s129
    %p131 = scmp.eq.s32.totalorder %s16, 0
    %p132 = por %p130, %p131
    %p133 = scmp.le.s32.totalorder 1, %s10
    %p134 = scmp.lt.s32.totalorder %s10, 3
    %p135 = pnand %p133, %p134
    %p136 = pneg %p135
    // Predicated region
    $region9: #{tpu_custom_call.1} parent=5 // pred_check
      _
    $region10: #{tpu_custom_call.1} parent=5 // pred_check_branch
      %138 = sbr.rel (%p135) target = $region12
    $region11: #{tpu_custom_call.1} parent=5 // pred_region
      %s139 = ssub.s32 %s10, 1
      // Predicated region
      $region13: #{tpu_custom_call.1} parent=11 // pred_check
        %p140 = pneg %p57
      $region14: #{tpu_custom_call.1} parent=11 // pred_check_branch
        %142 = sbr.rel (%p140) target = $region16
      $region15: #{tpu_custom_call.1} parent=11 // pred_region
        _
      $region16: #{tpu_custom_call.1} parent=11 // pred_fallthru
        _
      // Predicated region
      $region17: #{tpu_custom_call.1} parent=11 // pred_check
        %p143 = pneg %p78
      $region18: #{tpu_custom_call.1} parent=11 // pred_check_branch
        %145 = sbr.rel (%p143) target = $region20
      $region19: #{tpu_custom_call.1} parent=11 // pred_region
        _
      $region20: #{tpu_custom_call.1} parent=11 // pred_fallthru
        _
      // Predicated region
      $region21: #{tpu_custom_call.1} parent=11 // pred_check
        %p146 = pneg %p99
      $region22: #{tpu_custom_call.1} parent=11 // pred_check_branch
        %148 = sbr.rel (%p146) target = $region24
      $region23: #{tpu_custom_call.1} parent=11 // pred_region
        _
      $region24: #{tpu_custom_call.1} parent=11 // pred_fallthru
        _
    $region12: #{tpu_custom_call.1} parent=5 // pred_fallthru
      _
    %p149 = scmp.lt.s32.totalorder %s10, 2
    // Predicated region
    $region25: #{tpu_custom_call.1} parent=5 // pred_check
      %p150 = pneg %p149
    $region26: #{tpu_custom_call.1} parent=5 // pred_check_branch
      %152 = sbr.rel (%p150) target = $region28
    $region27: #{tpu_custom_call.1} parent=5 // pred_region
      // Predicated region
      $region29: #{tpu_custom_call.1} parent=27 // pred_check
        %p153 = pneg %p30
      $region30: #{tpu_custom_call.1} parent=27 // pred_check_branch
        %155 = sbr.rel (%p153) target = $region32
      $region31: #{tpu_custom_call.1} parent=27 // pred_region
        %s156 = smul.u32 8, %s10
        %p157 = scmp.lt.s32.totalorder %s156, 15
        %s158 = scalar_select %p157, %s156, 15
        %s159 = smul.addr %s158, 8
        %s160 = scalar_lea.vmem %s0, %s159
        %s161 = smul.u32 8, %s10
      $region32: #{tpu_custom_call.1} parent=27 // pred_fallthru
        _
    $region28: #{tpu_custom_call.1} parent=5 // pred_fallthru
      _
    %p162 = scmp.le.s32.totalorder 1, %s10
    %p163 = scmp.lt.s32.totalorder %s10, 3
    %p164 = pnand %p162, %p163
    %p165 = pneg %p164
    // Predicated region
    $region33: #{tpu_custom_call.1} parent=5 // pred_check
      _
    $region34: #{tpu_custom_call.1} parent=5 // pred_check_branch
      %167 = sbr.rel (%p164) target = $region36
    $region35: #{tpu_custom_call.1} parent=5 // pred_region
      %s168 = ssub.s32 %s10, 1
      %s169 = smul.u32 8, %s15
      %p170 = scmp.lt.s32.totalorder %s169, 15
      %s171 = scalar_select %p170, %s169, 15
      %s172 = smul.addr %s171, 8
      %s173 = scalar_lea.vmem %s0, %s172
      %p174 = pneg %p36
      %p175 = pneg %p33
      %p176 = pneg %p57
      %p177 = pneg %p54
      %p178 = pneg %p78
      %p179 = pneg %p75
      %p180 = pneg %p99
      %p181 = pneg %p96
      %p182 = pneg %p125
      %p183 = pneg %p122
      %s184 = smul.u32 8, %s15
      %p185 = scmp.lt.s32.totalorder %s184, 15
      %s186 = scalar_select %p185, %s184, 15
      %s187 = smul.addr %s186, 8
      %s188 = scalar_lea.vmem %s4, %s187
      %s189 = smul.u32 8, %s15
      %p190 = scmp.lt.s32.totalorder %s189, 15
      %s191 = scalar_select %p190, %s189, 15
      %s192 = smul.addr %s191, 8
      %s193 = scalar_lea.vmem %s0, %s192
      %s194 = smul.u32 8, %s15
      %s195 = smul.u32 8, %s15
      %p196 = scmp.lt.s32.totalorder %s195, 15
      %s197 = scalar_select %p196, %s195, 15
      %s198 = smul.addr %s197, 8
      %s199 = scalar_lea.vmem %s4, %s198
      %s200 = smul.u32 8, %s15
      %v201 = vld [vmem:[%s193] sm:$0xff]
      %v202 = vld [vmem:[%s193 + $0x8] sm:$0xff]
      %v203 = vld [vmem:[%s193 + $0x10] sm:$0xff]
      %v204 = vld [vmem:[%s193 + $0x18] sm:$0xff]
      %v205 = vld [vmem:[%s193 + $0x20] sm:$0xff]
      %v206 = vld [vmem:[%s193 + $0x28] sm:$0xff]
      %v207 = vld [vmem:[%s193 + $0x30] sm:$0xff]
      %v208 = vld [vmem:[%s193 + $0x38] sm:$0xff]
      %vm209 = vcmask 261120
      %v210 = vsel %vm209, %v201, 0.0
      %211 = vadd.xlane.f32.xlu0 %v210
      %v212 = vpop.xlane.xlu0 %211
      %v213 = vsel %vm209, %v202, 0.0
      %214 = vadd.xlane.f32.xlu0 %v213
      %v215 = vpop.xlane.xlu0 %214
      %v216 = vsel %vm209, %v203, 0.0
      %217 = vadd.xlane.f32.xlu0 %v216
      %v218 = vpop.xlane.xlu0 %217
      %v219 = vsel %vm209, %v204, 0.0
      %220 = vadd.xlane.f32.xlu0 %v219
      %v221 = vpop.xlane.xlu0 %220
      %v222 = vsel %vm209, %v205, 0.0
      %223 = vadd.xlane.f32.xlu0 %v222
      %v224 = vpop.xlane.xlu0 %223
      %v225 = vsel %vm209, %v206, 0.0
      %226 = vadd.xlane.f32.xlu0 %v225
      %v227 = vpop.xlane.xlu0 %226
      %v228 = vsel %vm209, %v207, 0.0
      %229 = vadd.xlane.f32.xlu0 %v228
      %v230 = vpop.xlane.xlu0 %229
      %v231 = vsel %vm209, %v208, 0.0
      %232 = vadd.xlane.f32.xlu0 %v231
      %v233 = vpop.xlane.xlu0 %232
      %v234 = vrcp.pop 32.0
      %v235 = vmul.f32 32.0, %v234
      %v236 = vsub.f32 1.0, %v235
      %v237 = vmul.f32 %v234, %v236
      %v238 = vadd.f32 %v234, %v237
      %vm239 = vweird.f32 %v234
      %v240 = vsel %vm239, %v234, %v238
      %v241 = vmul.f32 %v212, %v240
      %v242 = vmul.f32 %v215, %v240
      %v243 = vmul.f32 %v218, %v240
      %v244 = vmul.f32 %v221, %v240
      %v245 = vmul.f32 %v224, %v240
      %v246 = vmul.f32 %v227, %v240
      %v247 = vmul.f32 %v230, %v240
      %v248 = vmul.f32 %v233, %v240
      %v249 = vsub.f32 %v201, %v241
      %v250 = vsub.f32 %v202, %v242
      %v251 = vsub.f32 %v203, %v243
      %v252 = vsub.f32 %v204, %v244
      %v253 = vsub.f32 %v205, %v245
      %v254 = vsub.f32 %v206, %v246
      %v255 = vsub.f32 %v207, %v247
      %v256 = vsub.f32 %v208, %v248
      %v257 = vmul.f32 %v249, %v249
      %v258 = vmul.f32 %v250, %v250
      %v259 = vmul.f32 %v251, %v251
      %v260 = vmul.f32 %v252, %v252
      %v261 = vmul.f32 %v253, %v253
      %v262 = vmul.f32 %v254, %v254
      %v263 = vmul.f32 %v255, %v255
      %v264 = vmul.f32 %v256, %v256
      %v265 = vsel %vm209, %v257, 0.0
      %266 = vadd.xlane.f32.xlu0 %v265
      %v267 = vpop.xlane.xlu0 %266
      %v268 = vsel %vm209, %v258, 0.0
      %269 = vadd.xlane.f32.xlu0 %v268
      %v270 = vpop.xlane.xlu0 %269
      %v271 = vsel %vm209, %v259, 0.0
      %272 = vadd.xlane.f32.xlu0 %v271
      %v273 = vpop.xlane.xlu0 %272
      %v274 = vsel %vm209, %v260, 0.0
      %275 = vadd.xlane.f32.xlu0 %v274
      %v276 = vpop.xlane.xlu0 %275
      %v277 = vsel %vm209, %v261, 0.0
      %278 = vadd.xlane.f32.xlu0 %v277
      %v279 = vpop.xlane.xlu0 %278
      %v280 = vsel %vm209, %v262, 0.0
      %281 = vadd.xlane.f32.xlu0 %v280
      %v282 = vpop.xlane.xlu0 %281
      %v283 = vsel %vm209, %v263, 0.0
      %284 = vadd.xlane.f32.xlu0 %v283
      %v285 = vpop.xlane.xlu0 %284
      %v286 = vsel %vm209, %v264, 0.0
      %287 = vadd.xlane.f32.xlu0 %v286
      %v288 = vpop.xlane.xlu0 %287
      %v289 = vmul.f32 %v267, %v240
      %v290 = vmul.f32 %v270, %v240
      %v291 = vmul.f32 %v273, %v240
      %v292 = vmul.f32 %v276, %v240
      %v293 = vmul.f32 %v279, %v240
      %v294 = vmul.f32 %v282, %v240
      %v295 = vmul.f32 %v285, %v240
      %v296 = vmul.f32 %v288, %v240
      %v297 = vrsqrt.pop %v289
      %v298 = vmul.f32 %v297, %v289
      %v299 = vmul.f32 %v298, %v297
      %v300 = vmul.f32 0.5, %v299
      %v301 = vsub.f32 1.5, %v300
      %v302 = vmul.f32 %v297, %v301
      %v303 = vmul.f32 %v289, %v302
      %vm304 = vcmp.eq.f32.partialorder %v289, inf
      %v305 = vsel %vm304, %v289, %v303
      %vm306 = vcmp.eq.f32.partialorder %v289, 0.0
      %v307 = vand.u32 %v289, 2147483648
      %v308 = vsel %vm306, %v307, %v305
      %v309 = vrsqrt.pop %v290
      %v310 = vmul.f32 %v309, %v290
      %v311 = vmul.f32 %v310, %v309
      %v312 = vmul.f32 0.5, %v311
      %v313 = vsub.f32 1.5, %v312
      %v314 = vmul.f32 %v309, %v313
      %v315 = vmul.f32 %v290, %v314
      %vm316 = vcmp.eq.f32.partialorder %v290, inf
      %v317 = vsel %vm316, %v290, %v315
      %vm318 = vcmp.eq.f32.partialorder %v290, 0.0
      %v319 = vand.u32 %v290, 2147483648
      %v320 = vsel %vm318, %v319, %v317
      %v321 = vrsqrt.pop %v291
      %v322 = vmul.f32 %v321, %v291
      %v323 = vmul.f32 %v322, %v321
      %v324 = vmul.f32 0.5, %v323
      %v325 = vsub.f32 1.5, %v324
      %v326 = vmul.f32 %v321, %v325
      %v327 = vmul.f32 %v291, %v326
      %vm328 = vcmp.eq.f32.partialorder %v291, inf
      %v329 = vsel %vm328, %v291, %v327
      %vm330 = vcmp.eq.f32.partialorder %v291, 0.0
      %v331 = vand.u32 %v291, 2147483648
      %v332 = vsel %vm330, %v331, %v329
      %v333 = vrsqrt.pop %v292
      %v334 = vmul.f32 %v333, %v292
      %v335 = vmul.f32 %v334, %v333
      %v336 = vmul.f32 0.5, %v335
      %v337 = vsub.f32 1.5, %v336
      %v338 = vmul.f32 %v333, %v337
      %v339 = vmul.f32 %v292, %v338
      %vm340 = vcmp.eq.f32.partialorder %v292, inf
      %v341 = vsel %vm340, %v292, %v339
      %vm342 = vcmp.eq.f32.partialorder %v292, 0.0
      %v343 = vand.u32 %v292, 2147483648
      %v344 = vsel %vm342, %v343, %v341
      %v345 = vrsqrt.pop %v293
      %v346 = vmul.f32 %v345, %v293
      %v347 = vmul.f32 %v346, %v345
      %v348 = vmul.f32 0.5, %v347
      %v349 = vsub.f32 1.5, %v348
      %v350 = vmul.f32 %v345, %v349
      %v351 = vmul.f32 %v293, %v350
      %vm352 = vcmp.eq.f32.partialorder %v293, inf
      %v353 = vsel %vm352, %v293, %v351
      %vm354 = vcmp.eq.f32.partialorder %v293, 0.0
      %v355 = vand.u32 %v293, 2147483648
      %v356 = vsel %vm354, %v355, %v353
      %v357 = vrsqrt.pop %v294
      %v358 = vmul.f32 %v357, %v294
      %v359 = vmul.f32 %v358, %v357
      %v360 = vmul.f32 0.5, %v359
      %v361 = vsub.f32 1.5, %v360
      %v362 = vmul.f32 %v357, %v361
      %v363 = vmul.f32 %v294, %v362
      %vm364 = vcmp.eq.f32.partialorder %v294, inf
      %v365 = vsel %vm364, %v294, %v363
      %vm366 = vcmp.eq.f32.partialorder %v294, 0.0
      %v367 = vand.u32 %v294, 2147483648
      %v368 = vsel %vm366, %v367, %v365
      %v369 = vrsqrt.pop %v295
      %v370 = vmul.f32 %v369, %v295
      %v371 = vmul.f32 %v370, %v369
      %v372 = vmul.f32 0.5, %v371
      %v373 = vsub.f32 1.5, %v372
      %v374 = vmul.f32 %v369, %v373
      %v375 = vmul.f32 %v295, %v374
      %vm376 = vcmp.eq.f32.partialorder %v295, inf
      %v377 = vsel %vm376, %v295, %v375
      %vm378 = vcmp.eq.f32.partialorder %v295, 0.0
      %v379 = vand.u32 %v295, 2147483648
      %v380 = vsel %vm378, %v379, %v377
      %v381 = vrsqrt.pop %v296
      %v382 = vmul.f32 %v381, %v296
      %v383 = vmul.f32 %v382, %v381
      %v384 = vmul.f32 0.5, %v383
      %v385 = vsub.f32 1.5, %v384
      %v386 = vmul.f32 %v381, %v385
      %v387 = vmul.f32 %v296, %v386
      %vm388 = vcmp.eq.f32.partialorder %v296, inf
      %v389 = vsel %vm388, %v296, %v387
      %vm390 = vcmp.eq.f32.partialorder %v296, 0.0
      %v391 = vand.u32 %v296, 2147483648
      %v392 = vsel %vm390, %v391, %v389
      %v393 = vadd.f32 %v308, 1e-05
      %v394 = vadd.f32 %v320, 1e-05
      %v395 = vadd.f32 %v332, 1e-05
      %v396 = vadd.f32 %v344, 1e-05
      %v397 = vadd.f32 %v356, 1e-05
      %v398 = vadd.f32 %v368, 1e-05
      %v399 = vadd.f32 %v380, 1e-05
      %v400 = vadd.f32 %v392, 1e-05
      %v401 = vrcp.pop %v393
      %v402 = vmul.f32 %v393, %v401
      %v403 = vsub.f32 1.0, %v402
      %v404 = vmul.f32 %v401, %v403
      %v405 = vadd.f32 %v401, %v404
      %vm406 = vweird.f32 %v393
      %vm407 = vweird.f32 %v401
      %vm408 = vmor %vm406, %vm407
      %v409 = vsel %vm408, %v401, %v405
      %v410 = vand.u32 2147483647, %v393
      %vm411 = vcmp.eq.f32.partialorder %v410, 8.507059e+37
      %v412 = vand.u32 %v393, 2147483648
      %v413 = vor.u32 1.1754944e-38, %v412
      %v414 = vsel %vm411, %v413, %v409
      %v415 = vmul.f32 %v249, %v414
      %v416 = vrcp.pop %v394
      %v417 = vmul.f32 %v394, %v416
      %v418 = vsub.f32 1.0, %v417
      %v419 = vmul.f32 %v416, %v418
      %v420 = vadd.f32 %v416, %v419
      %vm421 = vweird.f32 %v394
      %vm422 = vweird.f32 %v416
      %vm423 = vmor %vm421, %vm422
      %v424 = vsel %vm423, %v416, %v420
      %v425 = vand.u32 2147483647, %v394
      %vm426 = vcmp.eq.f32.partialorder %v425, 8.507059e+37
      %v427 = vand.u32 %v394, 2147483648
      %v428 = vor.u32 1.1754944e-38, %v427
      %v429 = vsel %vm426, %v428, %v424
      %v430 = vmul.f32 %v250, %v429
      %v431 = vrcp.pop %v395
      %v432 = vmul.f32 %v395, %v431
      %v433 = vsub.f32 1.0, %v432
      %v434 = vmul.f32 %v431, %v433
      %v435 = vadd.f32 %v431, %v434
      %vm436 = vweird.f32 %v395
      %vm437 = vweird.f32 %v431
      %vm438 = vmor %vm436, %vm437
      %v439 = vsel %vm438, %v431, %v435
      %v440 = vand.u32 2147483647, %v395
      %vm441 = vcmp.eq.f32.partialorder %v440, 8.507059e+37
      %v442 = vand.u32 %v395, 2147483648
      %v443 = vor.u32 1.1754944e-38, %v442
      %v444 = vsel %vm441, %v443, %v439
      %v445 = vmul.f32 %v251, %v444
      %v446 = vrcp.pop %v396
      %v447 = vmul.f32 %v396, %v446
      %v448 = vsub.f32 1.0, %v447
      %v449 = vmul.f32 %v446, %v448
      %v450 = vadd.f32 %v446, %v449
      %vm451 = vweird.f32 %v396
      %vm452 = vweird.f32 %v446
      %vm453 = vmor %vm451, %vm452
      %v454 = vsel %vm453, %v446, %v450
      %v455 = vand.u32 2147483647, %v396
      %vm456 = vcmp.eq.f32.partialorder %v455, 8.507059e+37
      %v457 = vand.u32 %v396, 2147483648
      %v458 = vor.u32 1.1754944e-38, %v457
      %v459 = vsel %vm456, %v458, %v454
      %v460 = vmul.f32 %v252, %v459
      %v461 = vrcp.pop %v397
      %v462 = vmul.f32 %v397, %v461
      %v463 = vsub.f32 1.0, %v462
      %v464 = vmul.f32 %v461, %v463
      %v465 = vadd.f32 %v461, %v464
      %vm466 = vweird.f32 %v397
      %vm467 = vweird.f32 %v461
      %vm468 = vmor %vm466, %vm467
      %v469 = vsel %vm468, %v461, %v465
      %v470 = vand.u32 2147483647, %v397
      %vm471 = vcmp.eq.f32.partialorder %v470, 8.507059e+37
      %v472 = vand.u32 %v397, 2147483648
      %v473 = vor.u32 1.1754944e-38, %v472
      %v474 = vsel %vm471, %v473, %v469
      %v475 = vmul.f32 %v253, %v474
      %v476 = vrcp.pop %v398
      %v477 = vmul.f32 %v398, %v476
      %v478 = vsub.f32 1.0, %v477
      %v479 = vmul.f32 %v476, %v478
      %v480 = vadd.f32 %v476, %v479
      %vm481 = vweird.f32 %v398
      %vm482 = vweird.f32 %v476
      %vm483 = vmor %vm481, %vm482
      %v484 = vsel %vm483, %v476, %v480
      %v485 = vand.u32 2147483647, %v398
      %vm486 = vcmp.eq.f32.partialorder %v485, 8.507059e+37
      %v487 = vand.u32 %v398, 2147483648
      %v488 = vor.u32 1.1754944e-38, %v487
      %v489 = vsel %vm486, %v488, %v484
      %v490 = vmul.f32 %v254, %v489
      %v491 = vrcp.pop %v399
      %v492 = vmul.f32 %v399, %v491
      %v493 = vsub.f32 1.0, %v492
      %v494 = vmul.f32 %v491, %v493
      %v495 = vadd.f32 %v491, %v494
      %vm496 = vweird.f32 %v399
      %vm497 = vweird.f32 %v491
      %vm498 = vmor %vm496, %vm497
      %v499 = vsel %vm498, %v491, %v495
      %v500 = vand.u32 2147483647, %v399
      %vm501 = vcmp.eq.f32.partialorder %v500, 8.507059e+37
      %v502 = vand.u32 %v399, 2147483648
      %v503 = vor.u32 1.1754944e-38, %v502
      %v504 = vsel %vm501, %v503, %v499
      %v505 = vmul.f32 %v255, %v504
      %v506 = vrcp.pop %v400
      %v507 = vmul.f32 %v400, %v506
      %v508 = vsub.f32 1.0, %v507
      %v509 = vmul.f32 %v506, %v508
      %v510 = vadd.f32 %v506, %v509
      %vm511 = vweird.f32 %v400
      %vm512 = vweird.f32 %v506
      %vm513 = vmor %vm511, %vm512
      %v514 = vsel %vm513, %v506, %v510
      %v515 = vand.u32 2147483647, %v400
      %vm516 = vcmp.eq.f32.partialorder %v515, 8.507059e+37
      %v517 = vand.u32 %v400, 2147483648
      %v518 = vor.u32 1.1754944e-38, %v517
      %v519 = vsel %vm516, %v518, %v514
      %v520 = vmul.f32 %v256, %v519
      %v521 = vld [vmem:[%s1] sm:$0x1]
      %v523 = vperm.slane %v521, 0
      %v525 = vmul.f32 %v415, %v523
      %v526 = vmul.f32 %v430, %v523
      %v527 = vmul.f32 %v445, %v523
      %v528 = vmul.f32 %v460, %v523
      %v529 = vmul.f32 %v475, %v523
      %v530 = vmul.f32 %v490, %v523
      %v531 = vmul.f32 %v505, %v523
      %v532 = vmul.f32 %v520, %v523
      %v533 = vld [vmem:[%s2] sm:$0x1]
      %v535 = vperm.slane %v533, 0
      %v537 = vadd.f32 %v525, %v535
      %v538 = vadd.f32 %v526, %v535
      %v539 = vadd.f32 %v527, %v535
      %v540 = vadd.f32 %v528, %v535
      %v541 = vadd.f32 %v529, %v535
      %v542 = vadd.f32 %v530, %v535
      %v543 = vadd.f32 %v531, %v535
      %v544 = vadd.f32 %v532, %v535
      %v545 = vld [vmem:[%s3] sm:$0xff]
      %v546 = vld [vmem:[%s3 + $0x8] sm:$0xff]
      %v547 = vld [vmem:[%s3 + $0x10] sm:$0xff]
      %v548 = vld [vmem:[%s3 + $0x18] sm:$0xff]
      %v550 = vsel %vm209, %v537, 0
      %v553 = vsel %vm209, %v538, 0
      %v556 = vsel %vm209, %v539, 0
      %v559 = vsel %vm209, %v540, 0
      %v562 = vsel %vm209, %v541, 0
      %v565 = vsel %vm209, %v542, 0
      %v568 = vsel %vm209, %v543, 0
      %v571 = vsel %vm209, %v544, 0
      %573 = vmatpush.msra.mxu0 0.0
      %574 = vmatpush.msra.mxu0 0.0
      %575 = vmatpush.msra.mxu0 0.0
      %576 = vmatpush.msra.mxu0 0.0
      %577 = vmatpush.msra.mxu0 0.0
      %578 = vmatpush.msra.mxu0 0.0
      %579 = vmatpush.msra.mxu0 0.0
      %580 = vmatpush.msra.mxu0 0.0
      %581 = vmatpush.msra.mxu0 0.0
      %582 = vmatpush.msra.mxu0 0.0
      %583 = vmatpush.msra.mxu0 0.0
      %584 = vmatpush.msra.mxu0 0.0
      %585 = vmatpush.msra.mxu0 %v548
      %586 = vmatpush.msra.mxu0 %v547
      %587 = vmatpush.msra.mxu0 %v546
      %588 = vmatpush.msra.mxu0 %v545
      %589 = vmatmul.f32.gmra.mxu0 %v550
      %v590 = vpop.f32.mrf.mxu0
      %v591 = vadd.f32 0.0, %v590
      %592 = vmatmul.f32.gmra.mxu0 %v553
      %v593 = vpop.f32.mrf.mxu0
      %v594 = vadd.f32 0.0, %v593
      %595 = vmatmul.f32.gmra.mxu0 %v556
      %v596 = vpop.f32.mrf.mxu0
      %v597 = vadd.f32 0.0, %v596
      %598 = vmatmul.f32.gmra.mxu0 %v559
      %v599 = vpop.f32.mrf.mxu0
      %v600 = vadd.f32 0.0, %v599
      %601 = vmatmul.f32.gmra.mxu0 %v562
      %v602 = vpop.f32.mrf.mxu0
      %v603 = vadd.f32 0.0, %v602
      %604 = vmatmul.f32.gmra.mxu0 %v565
      %v605 = vpop.f32.mrf.mxu0
      %v606 = vadd.f32 0.0, %v605
      %607 = vmatmul.f32.gmra.mxu0 %v568
      %v608 = vpop.f32.mrf.mxu0
      %v609 = vadd.f32 0.0, %v608
      %610 = vmatmul.f32.gmra.mxu0 %v571
      %v611 = vpop.f32.mrf.mxu0
      %v612 = vadd.f32 0.0, %v611
      %613 = vdwg.mxu0
      %vm614 = vcmask 785408
      %615 = vst.msk [vmem:[%s199] sm:$0xff] %vm614, %v591
      %616 = vst.msk [vmem:[%s199 + $0x8] sm:$0xff] %vm614, %v594
      %617 = vst.msk [vmem:[%s199 + $0x10] sm:$0xff] %vm614, %v597
      %618 = vst.msk [vmem:[%s199 + $0x18] sm:$0xff] %vm614, %v600
      %619 = vst.msk [vmem:[%s199 + $0x20] sm:$0xff] %vm614, %v603
      %620 = vst.msk [vmem:[%s199 + $0x28] sm:$0xff] %vm614, %v606
      %621 = vst.msk [vmem:[%s199 + $0x30] sm:$0xff] %vm614, %v609
      %622 = vst.msk [vmem:[%s199 + $0x38] sm:$0xff] %vm614, %v612
      %s623 = smul.u32 8, %s15
      %p624 = scmp.lt.s32.totalorder %s623, 15
      %s625 = scalar_select %p624, %s623, 15
      %s626 = smul.addr %s625, 8
      %s627 = scalar_lea.vmem %s4, %s626
      // Predicated region
      $region37: #{tpu_custom_call.1} parent=35 // pred_check
        %p628 = pneg %p122
      $region38: #{tpu_custom_call.1} parent=35 // pred_check_branch
        %630 = sbr.rel (%p628) target = $region40
      $region39: #{tpu_custom_call.1} parent=35 // pred_region
        %s631 = smul.u32 8, %s15
      $region40: #{tpu_custom_call.1} parent=35 // pred_fallthru
        _
    $region36: #{tpu_custom_call.1} parent=5 // pred_fallthru
      _
    %p632 = scmp.le.s32.totalorder 2, %s10
    // Predicated region
    $region41: #{tpu_custom_call.1} parent=5 // pred_check
      %p633 = pneg %p632
    $region42: #{tpu_custom_call.1} parent=5 // pred_check_branch
      %635 = sbr.rel (%p633) target = $region44
    $region43: #{tpu_custom_call.1} parent=5 // pred_region
      %s636 = ssub.s32 %s10, 2
      // Predicated region
      $region45: #{tpu_custom_call.1} parent=43 // pred_check
        %p637 = pneg %p128
      $region46: #{tpu_custom_call.1} parent=43 // pred_check_branch
        %639 = sbr.rel (%p637) target = $region48
      $region47: #{tpu_custom_call.1} parent=43 // pred_region
        %s640 = smul.u32 8, %s16
        %p641 = scmp.lt.s32.totalorder %s640, 15
        %s642 = scalar_select %p641, %s640, 15
        %s643 = smul.addr %s642, 8
        %s644 = scalar_lea.vmem %s4, %s643
      $region48: #{tpu_custom_call.1} parent=43 // pred_fallthru
        _
    $region44: #{tpu_custom_call.1} parent=5 // pred_fallthru
      _
  $region6: #{tpu_custom_call.1} parent=0 // loop_footer
    %s14 = sadd.s32 1, %s10
  $region7: #{tpu_custom_call.1} parent=0 // loop_footer_branch
    %9 = sbr.rel target = $region3
  $region8: #{tpu_custom_call.1} parent=0 // loop_exit
    _

</llo_original>
